<compile_context>
chip_gen: v7x
topology: tpu7x:2x2x1
jax: 0.10.0
libtpu: 0.0.40
codegen_flags: <defaults>
</compile_context>

<pallas_src>
import functools

import jax
import jax.numpy as jnp
from jax.experimental import pallas as pl
from jax.experimental.pallas import tpu as pltpu

LANE = 128  # TPU lane width


def _round_up(n, m):
    return ((n + m - 1) // m) * m


# ----------------------------- Pallas kernel -------------------------------
def value_mlp_kernel(xf_ref, te_ref, w1x_ref, w1t_ref, b1_ref,
                     w2_ref, b2_ref, w3_ref, b3_ref, out_ref):
    # xf: [TB, XD]  te: [TB, E]   w1x: [XD, H1]  w1t: [E, H1]
    # w2: [H1, H1]  w3: [1, H1]   out: [1, TB]   (all dims padded to 128)
    h = (jnp.dot(xf_ref[...], w1x_ref[...], preferred_element_type=jnp.float32)
         + jnp.dot(te_ref[...], w1t_ref[...], preferred_element_type=jnp.float32)
         + b1_ref[...])
    h = jnp.maximum(h, 0.0)
    h = jnp.dot(h, w2_ref[...], preferred_element_type=jnp.float32) + b2_ref[...]
    h = jnp.maximum(h, 0.0)
    # Final layer has output width 1: contract the hidden axis of both
    # operands so the result comes out as a lane-dense (1, TB) row (batch on
    # the lane dimension) -> full-width stores instead of masked (TB,1)
    # column stores.
    vals = jax.lax.dot_general(
        w3_ref[...], h,
        dimension_numbers=(((1,), (1,)), ((), ())),
        preferred_element_type=jnp.float32)                     # [1, TB]
    out_ref[...] = vals + b3_ref[...]


def value_mlp_pallas(xf, te, params, *, tb):
    b_pad, xd_p = xf.shape
    e_p = te.shape[1]
    h1_p = params["w2"].shape[0]
    num_tiles = b_pad // tb

    grid_spec = pltpu.PrefetchScalarGridSpec(
        num_scalar_prefetch=0,
        grid=(num_tiles,),
        in_specs=[
            pl.BlockSpec((tb, xd_p), lambda i: (i, 0)),     # x_flat batch tile
            pl.BlockSpec((tb, e_p), lambda i: (i, 0)),      # time-emb batch tile
            pl.BlockSpec((xd_p, h1_p), lambda i: (0, 0)),   # w1_x  (VMEM-resident)
            pl.BlockSpec((e_p, h1_p), lambda i: (0, 0)),    # w1_t  (VMEM-resident)
            pl.BlockSpec((1, h1_p), lambda i: (0, 0)),      # b1
            pl.BlockSpec((h1_p, h1_p), lambda i: (0, 0)),   # w2    (VMEM-resident)
            pl.BlockSpec((1, h1_p), lambda i: (0, 0)),      # b2
            pl.BlockSpec((1, h1_p), lambda i: (0, 0)),      # w3 (row form)
            pl.BlockSpec((1, 1), lambda i: (0, 0)),         # b3
        ],
        out_specs=pl.BlockSpec((1, tb), lambda i: (i, 0)),  # lane-dense output row
    )
    return pl.pallas_call(
        value_mlp_kernel,
        out_shape=jax.ShapeDtypeStruct((num_tiles, tb), jnp.float32),
        grid_spec=grid_spec,
        compiler_params=pltpu.CompilerParams(
            dimension_semantics=("parallel",),
        ),
    )(xf, te, params["w1x"], params["w1t"], params["b1"],
      params["w2"], params["b2"], params["w3"], params["b3"])


# ------------------------------ glue (JAX) ---------------------------------
def sinusoidal_time_embedding(t, dim):
    # Standard diffuser-style sinusoidal embedding of the timestep.
    half = dim // 2
    freqs = jnp.exp(-jnp.log(10000.0) * jnp.arange(half, dtype=jnp.float32)
                    / (half - 1))
    args = t.astype(jnp.float32)[:, None] * freqs[None, :]
    return jnp.concatenate([jnp.sin(args), jnp.cos(args)], axis=-1)


def init_params(key, horizon, transition_dim, time_emb_dim, hidden):
    """Glorot-init weights, zero-padded to lane-aligned (multiple-of-128) dims."""
    xd, e = horizon * transition_dim, time_emb_dim
    xd_p = _round_up(xd, LANE)
    e_p = _round_up(e, LANE)
    h1_p = _round_up(hidden, LANE)

    k1, k2, k3, k4, k5, k6, k7 = jax.random.split(key, 7)

    def glorot_padded(k, fan_in, fan_out, padded_shape):
        scale = jnp.sqrt(2.0 / (fan_in + fan_out))
        w = jax.random.normal(k, (fan_in, fan_out), jnp.float32) * scale
        return jnp.zeros(padded_shape, jnp.float32).at[:fan_in, :fan_out].set(w)

    w3_col = jax.random.normal(k4, (hidden,), jnp.float32) * jnp.sqrt(2.0 / (hidden + 1))
    w3 = jnp.zeros((1, h1_p), jnp.float32).at[0, :hidden].set(w3_col)

    b1 = jnp.zeros((1, h1_p), jnp.float32).at[0, :hidden].set(
        0.01 * jax.random.normal(k5, (hidden,), jnp.float32))
    b2 = jnp.zeros((1, h1_p), jnp.float32).at[0, :hidden].set(
        0.01 * jax.random.normal(k6, (hidden,), jnp.float32))
    b3 = 0.01 * jax.random.normal(k7, (1, 1), jnp.float32)

    return dict(
        w1x=glorot_padded(k1, xd, hidden, (xd_p, h1_p)),
        w1t=glorot_padded(k2, e, hidden, (e_p, h1_p)),
        b1=b1,
        w2=glorot_padded(k3, hidden, hidden, (h1_p, h1_p)),
        b2=b2,
        w3=w3,
        b3=b3,
    )


def value_guide_forward(params, x, cond, t, time_emb_dim, tb=128):
    """Equivalent of ValueGuide.forward: model(x, cond, t).squeeze(-1)."""
    B, H, D = x.shape
    xd, e = H * D, time_emb_dim
    xd_p = params["w1x"].shape[0]
    e_p = params["w1t"].shape[0]
    b_pad = _round_up(B, tb)

    # apply_conditioning: pin the state at timestep 0 to `cond`
    x = x.at[:, 0, :].set(cond)
    temb = sinusoidal_time_embedding(t, time_emb_dim)                    # [B, E]

    # Zero-pad batch / feature dims to lane-aligned shapes (exact: the
    # corresponding padded weight rows are zero).
    xf = jnp.zeros((b_pad, xd_p), jnp.float32).at[:B, :xd].set(x.reshape(B, xd))
    te = jnp.zeros((b_pad, e_p), jnp.float32).at[:B, :e].set(temb)

    out = value_mlp_pallas(xf, te, params, tb=tb)          # [b_pad//tb, tb]
    return out.reshape(b_pad)[:B]                          # [B] (ValueGuide squeeze)


def value_guide_reference(params, x, cond, t, time_emb_dim):
    # pure-JAX reference for correctness checking
    B, H, D = x.shape
    xd = H * D
    xd_p = params["w1x"].shape[0]
    e_p = params["w1t"].shape[0]
    x = x.at[:, 0, :].set(cond)
    temb = sinusoidal_time_embedding(t, time_emb_dim)
    xf = jnp.zeros((B, xd_p), jnp.float32).at[:, :xd].set(x.reshape(B, xd))
    te = jnp.zeros((B, e_p), jnp.float32).at[:, :time_emb_dim].set(temb)
    h = jnp.maximum(xf @ params["w1x"] + te @ params["w1t"] + params["b1"], 0.0)
    h = jnp.maximum(h @ params["w2"] + params["b2"], 0.0)
    return jnp.sum(h * params["w3"], axis=-1) + params["b3"][0, 0]


# -------------------------------- main --------------------------------------
if __name__ == "__main__":
    B, H, D = 2, 8, 4          # batch, horizon, transition_dim
    TIME_EMB, HIDDEN = 16, 32

    key = jax.random.PRNGKey(0)
    kx, kc, kt, kp = jax.random.split(key, 4)
    x = jax.random.normal(kx, (B, H, D), jnp.float32)
    cond = jax.random.normal(kc, (B, D), jnp.float32)
    t = jax.random.randint(kt, (B,), 0, 100, jnp.int32)
    params = init_params(kp, H, D, TIME_EMB, HIDDEN)

    fwd = jax.jit(functools.partial(value_guide_forward, time_emb_dim=TIME_EMB))
    y = jax.block_until_ready(fwd(params, x, cond, t))

    y_ref = value_guide_reference(params, x, cond, t, TIME_EMB)
    assert y.shape == (B,), y.shape
    assert jnp.allclose(y, y_ref, atol=1e-3, rtol=1e-3), (y, y_ref)

    print("KERNEL_OK")
</pallas_src>

<mosaic_0001>
module attributes {stable_mosaic.version = 11 : i64} {
  func.func @value_mlp_kernel(%arg0: i32, %arg1: memref<128x128xf32, #tpu.memory_space<vmem>>, %arg2: memref<128x128xf32, #tpu.memory_space<vmem>>, %arg3: memref<128x128xf32, #tpu.memory_space<vmem>>, %arg4: memref<128x128xf32, #tpu.memory_space<vmem>>, %arg5: memref<1x128xf32, #tpu.memory_space<vmem>>, %arg6: memref<128x128xf32, #tpu.memory_space<vmem>>, %arg7: memref<1x128xf32, #tpu.memory_space<vmem>>, %arg8: memref<1x128xf32, #tpu.memory_space<vmem>>, %arg9: memref<1x1xf32, #tpu.memory_space<vmem>>, %arg10: memref<1x128xf32, #tpu.memory_space<vmem>>) attributes {dimension_semantics = [#tpu.dimension_semantics<parallel>], iteration_bounds = array<i64: 1>, scalar_prefetch = 0 : i64, scratch_operands = 0 : i64, tpu.core_type = #tpu.core_type<tc>, window_params = [{transform_indices = @transform_0, window_bounds = array<i64: 128, 128>}, {transform_indices = @transform_1, window_bounds = array<i64: 128, 128>}, {pipeline_mode = #tpu.pipeline_mode<synchronous>, transform_indices = @transform_2, window_bounds = array<i64: 128, 128>}, {pipeline_mode = #tpu.pipeline_mode<synchronous>, transform_indices = @transform_3, window_bounds = array<i64: 128, 128>}, {pipeline_mode = #tpu.pipeline_mode<synchronous>, transform_indices = @transform_4, window_bounds = array<i64: 1, 128>}, {pipeline_mode = #tpu.pipeline_mode<synchronous>, transform_indices = @transform_5, window_bounds = array<i64: 128, 128>}, {pipeline_mode = #tpu.pipeline_mode<synchronous>, transform_indices = @transform_6, window_bounds = array<i64: 1, 128>}, {pipeline_mode = #tpu.pipeline_mode<synchronous>, transform_indices = @transform_7, window_bounds = array<i64: 1, 128>}, {pipeline_mode = #tpu.pipeline_mode<synchronous>, transform_indices = @transform_8, window_bounds = array<i64: 1, 1>}, {transform_indices = @transform_9, window_bounds = array<i64: 1, 128>}]} {
    %c0 = arith.constant 0 : index
    %c0_0 = arith.constant 0 : index
    %0 = vector.load %arg1[%c0, %c0_0] : memref<128x128xf32, #tpu.memory_space<vmem>>, vector<128x128xf32>
    %c0_1 = arith.constant 0 : index
    %c0_2 = arith.constant 0 : index
    %1 = vector.load %arg3[%c0_1, %c0_2] : memref<128x128xf32, #tpu.memory_space<vmem>>, vector<128x128xf32>
    %cst = arith.constant dense<0.000000e+00> : vector<128x128xf32>
    %2 = tpu.matmul %0, %1, %cst {dimension_numbers = #tpu.dot_dimension_numbers<[1], [0], [0], [1], [0, 0, 1, 1], [], []>} : vector<128x128xf32>, vector<128x128xf32>, vector<128x128xf32> -> vector<128x128xf32>
    %c0_3 = arith.constant 0 : index
    %c0_4 = arith.constant 0 : index
    %3 = vector.load %arg2[%c0_3, %c0_4] : memref<128x128xf32, #tpu.memory_space<vmem>>, vector<128x128xf32>
    %c0_5 = arith.constant 0 : index
    %c0_6 = arith.constant 0 : index
    %4 = vector.load %arg4[%c0_5, %c0_6] : memref<128x128xf32, #tpu.memory_space<vmem>>, vector<128x128xf32>
    %cst_7 = arith.constant dense<0.000000e+00> : vector<128x128xf32>
    %5 = tpu.matmul %3, %4, %cst_7 {dimension_numbers = #tpu.dot_dimension_numbers<[1], [0], [0], [1], [0, 0, 1, 1], [], []>} : vector<128x128xf32>, vector<128x128xf32>, vector<128x128xf32> -> vector<128x128xf32>
    %6 = arith.addf %2, %5 : vector<128x128xf32>
    %c0_8 = arith.constant 0 : index
    %c0_9 = arith.constant 0 : index
    %7 = vector.load %arg5[%c0_8, %c0_9] : memref<1x128xf32, #tpu.memory_space<vmem>>, vector<1x128xf32>
    %8 = vector.broadcast %7 : vector<1x128xf32> to vector<128x128xf32>
    %9 = arith.addf %6, %8 : vector<128x128xf32>
    %cst_10 = arith.constant 0.000000e+00 : f32
    %10 = vector.broadcast %cst_10 : f32 to vector<128x128xf32>
    %11 = arith.maximumf %9, %10 : vector<128x128xf32>
    %c0_11 = arith.constant 0 : index
    %c0_12 = arith.constant 0 : index
    %12 = vector.load %arg6[%c0_11, %c0_12] : memref<128x128xf32, #tpu.memory_space<vmem>>, vector<128x128xf32>
    %cst_13 = arith.constant dense<0.000000e+00> : vector<128x128xf32>
    %13 = tpu.matmul %11, %12, %cst_13 {dimension_numbers = #tpu.dot_dimension_numbers<[1], [0], [0], [1], [0, 0, 1, 1], [], []>} : vector<128x128xf32>, vector<128x128xf32>, vector<128x128xf32> -> vector<128x128xf32>
    %c0_14 = arith.constant 0 : index
    %c0_15 = arith.constant 0 : index
    %14 = vector.load %arg7[%c0_14, %c0_15] : memref<1x128xf32, #tpu.memory_space<vmem>>, vector<1x128xf32>
    %15 = vector.broadcast %14 : vector<1x128xf32> to vector<128x128xf32>
    %16 = arith.addf %13, %15 : vector<128x128xf32>
    %cst_16 = arith.constant 0.000000e+00 : f32
    %17 = vector.broadcast %cst_16 : f32 to vector<128x128xf32>
    %18 = arith.maximumf %16, %17 : vector<128x128xf32>
    %c0_17 = arith.constant 0 : index
    %c0_18 = arith.constant 0 : index
    %19 = vector.load %arg8[%c0_17, %c0_18] : memref<1x128xf32, #tpu.memory_space<vmem>>, vector<1x128xf32>
    %cst_19 = arith.constant dense<0.000000e+00> : vector<1x128xf32>
    %20 = tpu.matmul %19, %18, %cst_19 {dimension_numbers = #tpu.dot_dimension_numbers<[1], [1], [0], [0], [0, 0, 1, 0], [], []>} : vector<1x128xf32>, vector<128x128xf32>, vector<1x128xf32> -> vector<1x128xf32>
    %c0_20 = arith.constant 0 : index
    %c0_21 = arith.constant 0 : index
    %21 = vector.load %arg9[%c0_20, %c0_21] : memref<1x1xf32, #tpu.memory_space<vmem>>, vector<1x1xf32>
    %22 = vector.broadcast %21 : vector<1x1xf32> to vector<1x128xf32>
    %23 = arith.addf %20, %22 : vector<1x128xf32>
    %c0_22 = arith.constant 0 : index
    %c0_23 = arith.constant 0 : index
    %24 = vector.load %arg10[%c0_22, %c0_23] : memref<1x128xf32, #tpu.memory_space<vmem>>, vector<1x128xf32>
    tpu.vector_store %arg10[%c0_22, %c0_23], %23 {strides = array<i32>} : memref<1x128xf32, #tpu.memory_space<vmem>>, vector<1x128xf32>,
    return
  }
  func.func @transform_0(%arg0: i32) -> (i32, i32) {
    %c0_i32 = arith.constant 0 : i32
    %c0_i32_0 = arith.constant 0 : i32
    return %arg0, %c0_i32 : i32, i32
  }
  func.func @transform_1(%arg0: i32) -> (i32, i32) {
    %c0_i32 = arith.constant 0 : i32
    %c0_i32_0 = arith.constant 0 : i32
    return %arg0, %c0_i32 : i32, i32
  }
  func.func @transform_2(%arg0: i32) -> (i32, i32) {
    %c0_i32 = arith.constant 0 : i32
    %c0_i32_0 = arith.constant 0 : i32
    %c0_i32_1 = arith.constant 0 : i32
    return %c0_i32, %c0_i32_0 : i32, i32
  }
  func.func @transform_3(%arg0: i32) -> (i32, i32) {
    %c0_i32 = arith.constant 0 : i32
    %c0_i32_0 = arith.constant 0 : i32
    %c0_i32_1 = arith.constant 0 : i32
    return %c0_i32, %c0_i32_0 : i32, i32
  }
  func.func @transform_4(%arg0: i32) -> (i32, i32) {
    %c0_i32 = arith.constant 0 : i32
    %c0_i32_0 = arith.constant 0 : i32
    %c0_i32_1 = arith.constant 0 : i32
    return %c0_i32, %c0_i32_0 : i32, i32
  }
  func.func @transform_5(%arg0: i32) -> (i32, i32) {
    %c0_i32 = arith.constant 0 : i32
    %c0_i32_0 = arith.constant 0 : i32
    %c0_i32_1 = arith.constant 0 : i32
    return %c0_i32, %c0_i32_0 : i32, i32
  }
  func.func @transform_6(%arg0: i32) -> (i32, i32) {
    %c0_i32 = arith.constant 0 : i32
    %c0_i32_0 = arith.constant 0 : i32
    %c0_i32_1 = arith.constant 0 : i32
    return %c0_i32, %c0_i32_0 : i32, i32
  }
  func.func @transform_7(%arg0: i32) -> (i32, i32) {
    %c0_i32 = arith.constant 0 : i32
    %c0_i32_0 = arith.constant 0 : i32
    %c0_i32_1 = arith.constant 0 : i32
    return %c0_i32, %c0_i32_0 : i32, i32
  }
  func.func @transform_8(%arg0: i32) -> (i32, i32) {
    %c0_i32 = arith.constant 0 : i32
    %c0_i32_0 = arith.constant 0 : i32
    %c0_i32_1 = arith.constant 0 : i32
    return %c0_i32, %c0_i32_0 : i32, i32
  }
  func.func @transform_9(%arg0: i32) -> (i32, i32) {
    %c0_i32 = arith.constant 0 : i32
    %c0_i32_0 = arith.constant 0 : i32
    return %arg0, %c0_i32 : i32, i32
  }
}

</mosaic_0001>

<llo_original>
// kernel: value_guide_forward.1
$region0: #{value_guide_forward.1}
  #allocation0 [shape = 'u32[]', space=smem, size = 0x4, offset = 0x4, fixed_abs, tag = 'smem constant byte address 0x4 - core index']
  #allocation1 [shape = 'u32[144,128]{1,0:T(1,128)}', space=vmem, size = 0x12000, scoped, tag = 'internal scratch']
  #allocation2 [shape = 'f32[1,1]{1,0:T(1,128)S(1)}', space=vmem, size = 0x200, scoped, tag = 'scoped memory for value_guide_forward.1']
  %s0 = inlined_call_operand.vmem [shape: f32[128,128], index: 0, kind: input, shape index: {}]
  %s1 = inlined_call_operand.vmem [shape: f32[128,128], index: 1, kind: input, shape index: {}]
  %s2 = inlined_call_operand.vmem [shape: f32[128,128], index: 2, kind: input, shape index: {}]
  %s3 = inlined_call_operand.vmem [shape: f32[128,128], index: 3, kind: input, shape index: {}]
  %s4 = inlined_call_operand.vmem [shape: f32[1,128], index: 4, kind: input, shape index: {}]
  %s5 = inlined_call_operand.vmem [shape: f32[128,128], index: 5, kind: input, shape index: {}]
  %s6 = inlined_call_operand.vmem [shape: f32[1,128], index: 6, kind: input, shape index: {}]
  %s7 = inlined_call_operand.hbm [shape: f32[1,128], index: 7, kind: input, shape index: {}]
  %s8 = inlined_call_operand.<no memory space> [shape: f32[1,1], index: 8, kind: input, shape index: {}]
  %s9 = inlined_call_operand.vmem [shape: f32[1,128], index: 9, kind: output, shape index: {}]
  %s10 = sld [smem:[#allocation0]]
  $region50: #{value_guide_forward.1} parent=0
    _
  %s12 = ssub.s32 1, %s10
  %s13 = scalar_select 0, %s12, %s10
  %v14 = vstv %s8
  %15 = vst [vmem:[#allocation2] sm:$0x1] %v14
  $region1: #{value_guide_forward.1} parent=0
    #allocation3 [shape = 'u8[512]{0}', space=vmem, size = 0x400, scoped, tag = 'input window, operand 7, single buffered']
    #allocation4 [shape = 's32[1]{0}', space=sflag, size = 0x4, scoped, tag = 'scoped memory for value_guide_forward.1']
    %16 = vsyncpa [#allocation4], 0
    // Predicated region
    $region2: #{value_guide_forward.1} parent=1 // pred_check
      _
    $region3: #{value_guide_forward.1} parent=1 // pred_check_branch
      %18 = sbr.rel (0) target = $region5
    $region4: #{value_guide_forward.1} parent=1 // pred_region
      _
    $region5: #{value_guide_forward.1} parent=1 // pred_fallthru
      _
    // Predicated region
    $region6: #{value_guide_forward.1} parent=1 // pred_check
      _
    $region7: #{value_guide_forward.1} parent=1 // pred_check_branch
      %20 = sbr.rel (0) target = $region9
    $region8: #{value_guide_forward.1} parent=1 // pred_region
      _
    $region9: #{value_guide_forward.1} parent=1 // pred_fallthru
      _
    // Predicated region
    $region10: #{value_guide_forward.1} parent=1 // pred_check
      _
    $region11: #{value_guide_forward.1} parent=1 // pred_check_branch
      %22 = sbr.rel (0) target = $region13
    $region12: #{value_guide_forward.1} parent=1 // pred_region
      _
    $region13: #{value_guide_forward.1} parent=1 // pred_fallthru
      _
    // Predicated region
    $region14: #{value_guide_forward.1} parent=1 // pred_check
      _
    $region15: #{value_guide_forward.1} parent=1 // pred_check_branch
      %24 = sbr.rel (0) target = $region17
    $region16: #{value_guide_forward.1} parent=1 // pred_region
      _
    $region17: #{value_guide_forward.1} parent=1 // pred_fallthru
      _
    // Predicated region
    $region18: #{value_guide_forward.1} parent=1 // pred_check
      _
    $region19: #{value_guide_forward.1} parent=1 // pred_check_branch
      %26 = sbr.rel (0) target = $region21
    $region20: #{value_guide_forward.1} parent=1 // pred_region
      _
    $region21: #{value_guide_forward.1} parent=1 // pred_fallthru
      _
    // Predicated region
    $region22: #{value_guide_forward.1} parent=1 // pred_check
      _
    $region23: #{value_guide_forward.1} parent=1 // pred_check_branch
      %28 = sbr.rel (0) target = $region25
    $region24: #{value_guide_forward.1} parent=1 // pred_region
      _
    $region25: #{value_guide_forward.1} parent=1 // pred_fallthru
      _
    // Predicated region
    $region26: #{value_guide_forward.1} parent=1 // pred_check
      _
    $region27: #{value_guide_forward.1} parent=1 // pred_check_branch
      %30 = sbr.rel (0) target = $region29
    $region28: #{value_guide_forward.1} parent=1 // pred_region
      _
    $region29: #{value_guide_forward.1} parent=1 // pred_fallthru
      _
    // Predicated region
    $region30: #{value_guide_forward.1} parent=1 // pred_check
      _
    $region31: #{value_guide_forward.1} parent=1 // pred_check_branch
      %32 = sbr.rel (0) target = $region33
    $region32: #{value_guide_forward.1} parent=1 // pred_region
      %s34 = ssub.s32 16, 16
      %35 = vsyncadd [#allocation4], %s34
      %s37 = sshll.u32 [#allocation3], 4
      %s38 = int_to_ptr.vmem [resolvable:$true] %s37
      %40 = dma.hbm_to_vmem [thread:$0]  %s7, 16, %s38, [#allocation4]
    $region33: #{value_guide_forward.1} parent=1 // pred_fallthru
      _
    // Predicated region
    $region34: #{value_guide_forward.1} parent=1 // pred_check
      _
    $region35: #{value_guide_forward.1} parent=1 // pred_check_branch
      %42 = sbr.rel (0) target = $region37
    $region36: #{value_guide_forward.1} parent=1 // pred_region
      _
    $region37: #{value_guide_forward.1} parent=1 // pred_fallthru
      _
    // Predicated region
    $region38: #{value_guide_forward.1} parent=1 // pred_check
      _
    $region39: #{value_guide_forward.1} parent=1 // pred_check_branch
      %44 = sbr.rel (0) target = $region41
    $region40: #{value_guide_forward.1} parent=1 // pred_region
      %45 = dma.done [#allocation4], 16
    $region41: #{value_guide_forward.1} parent=1 // pred_fallthru
      _
    %v46 = vld [vmem:[%s0] sm:$0xff]
    %v47 = vld [vmem:[%s0 + $0x8] sm:$0xff]
    %v48 = vld [vmem:[%s0 + $0x10] sm:$0xff]
    %v49 = vld [vmem:[%s0 + $0x18] sm:$0xff]
    %v50 = vld [vmem:[%s0 + $0x20] sm:$0xff]
    %v51 = vld [vmem:[%s0 + $0x28] sm:$0xff]
    %v52 = vld [vmem:[%s0 + $0x30] sm:$0xff]
    %v53 = vld [vmem:[%s0 + $0x38] sm:$0xff]
    %v54 = vld [vmem:[%s0 + $0x40] sm:$0xff]
    %v55 = vld [vmem:[%s0 + $0x48] sm:$0xff]
    %v56 = vld [vmem:[%s0 + $0x50] sm:$0xff]
    %v57 = vld [vmem:[%s0 + $0x58] sm:$0xff]
    %v58 = vld [vmem:[%s0 + $0x60] sm:$0xff]
    %v59 = vld [vmem:[%s0 + $0x68] sm:$0xff]
    %v60 = vld [vmem:[%s0 + $0x70] sm:$0xff]
    %v61 = vld [vmem:[%s0 + $0x78] sm:$0xff]
    %v62 = vld [vmem:[%s2] sm:$0xff]
    %v63 = vld [vmem:[%s2 + $0x8] sm:$0xff]
    %v64 = vld [vmem:[%s2 + $0x10] sm:$0xff]
    %v65 = vld [vmem:[%s2 + $0x18] sm:$0xff]
    %v66 = vld [vmem:[%s2 + $0x20] sm:$0xff]
    %v67 = vld [vmem:[%s2 + $0x28] sm:$0xff]
    %v68 = vld [vmem:[%s2 + $0x30] sm:$0xff]
    %v69 = vld [vmem:[%s2 + $0x38] sm:$0xff]
    %v70 = vld [vmem:[%s2 + $0x40] sm:$0xff]
    %v71 = vld [vmem:[%s2 + $0x48] sm:$0xff]
    %v72 = vld [vmem:[%s2 + $0x50] sm:$0xff]
    %v73 = vld [vmem:[%s2 + $0x58] sm:$0xff]
    %v74 = vld [vmem:[%s2 + $0x60] sm:$0xff]
    %v75 = vld [vmem:[%s2 + $0x68] sm:$0xff]
    %v76 = vld [vmem:[%s2 + $0x70] sm:$0xff]
    %v77 = vld [vmem:[%s2 + $0x78] sm:$0xff]
    %v78 = vld [vmem:[%s1] sm:$0xff]
    %v79 = vld [vmem:[%s1 + $0x8] sm:$0xff]
    %v80 = vld [vmem:[%s1 + $0x10] sm:$0xff]
    %v81 = vld [vmem:[%s1 + $0x18] sm:$0xff]
    %v82 = vld [vmem:[%s1 + $0x20] sm:$0xff]
    %v83 = vld [vmem:[%s1 + $0x28] sm:$0xff]
    %v84 = vld [vmem:[%s1 + $0x30] sm:$0xff]
    %v85 = vld [vmem:[%s1 + $0x38] sm:$0xff]
    %v86 = vld [vmem:[%s1 + $0x40] sm:$0xff]
    %v87 = vld [vmem:[%s1 + $0x48] sm:$0xff]
    %v88 = vld [vmem:[%s1 + $0x50] sm:$0xff]
    %v89 = vld [vmem:[%s1 + $0x58] sm:$0xff]
    %v90 = vld [vmem:[%s1 + $0x60] sm:$0xff]
    %v91 = vld [vmem:[%s1 + $0x68] sm:$0xff]
    %v92 = vld [vmem:[%s1 + $0x70] sm:$0xff]
    %v93 = vld [vmem:[%s1 + $0x78] sm:$0xff]
    %v94 = vld [vmem:[%s3] sm:$0xff]
    %v95 = vld [vmem:[%s3 + $0x8] sm:$0xff]
    %v96 = vld [vmem:[%s3 + $0x10] sm:$0xff]
    %v97 = vld [vmem:[%s3 + $0x18] sm:$0xff]
    %v98 = vld [vmem:[%s3 + $0x20] sm:$0xff]
    %v99 = vld [vmem:[%s3 + $0x28] sm:$0xff]
    %v100 = vld [vmem:[%s3 + $0x30] sm:$0xff]
    %v101 = vld [vmem:[%s3 + $0x38] sm:$0xff]
    %v102 = vld [vmem:[%s3 + $0x40] sm:$0xff]
    %v103 = vld [vmem:[%s3 + $0x48] sm:$0xff]
    %v104 = vld [vmem:[%s3 + $0x50] sm:$0xff]
    %v105 = vld [vmem:[%s3 + $0x58] sm:$0xff]
    %v106 = vld [vmem:[%s3 + $0x60] sm:$0xff]
    %v107 = vld [vmem:[%s3 + $0x68] sm:$0xff]
    %v108 = vld [vmem:[%s3 + $0x70] sm:$0xff]
    %v109 = vld [vmem:[%s3 + $0x78] sm:$0xff]
    %110 = vmatprep.subr.mxu0 0.0
    %111 = vmatpush1.msra.mxu0 %v94
    %112 = vmatprep.subr.mxu0 0.0
    %113 = vmatpush1.msra.mxu0 %v95
    %114 = vmatprep.subr.mxu0 0.0
    %115 = vmatpush1.msra.mxu0 %v96
    %116 = vmatprep.subr.mxu0 0.0
    %117 = vmatpush1.msra.mxu0 %v97
    %118 = vmatprep.subr.mxu0 0.0
    %119 = vmatpush1.msra.mxu0 %v98
    %120 = vmatprep.subr.mxu0 0.0
    %121 = vmatpush1.msra.mxu0 %v99
    %122 = vmatprep.subr.mxu0 0.0
    %123 = vmatpush1.msra.mxu0 %v100
    %124 = vmatprep.subr.mxu0 0.0
    %125 = vmatpush1.msra.mxu0 %v101
    %126 = vmatprep.subr.mxu0 0.0
    %127 = vmatpush1.msra.mxu0 %v102
    %128 = vmatprep.subr.mxu0 0.0
    %129 = vmatpush1.msra.mxu0 %v103
    %130 = vmatprep.subr.mxu0 0.0
    %131 = vmatpush1.msra.mxu0 %v104
    %132 = vmatprep.subr.mxu0 0.0
    %133 = vmatpush1.msra.mxu0 %v105
    %134 = vmatprep.subr.mxu0 0.0
    %135 = vmatpush1.msra.mxu0 %v106
    %136 = vmatprep.subr.mxu0 0.0
    %137 = vmatpush1.msra.mxu0 %v107
    %138 = vmatprep.subr.mxu0 0.0
    %139 = vmatpush1.msra.mxu0 %v108
    %140 = vmatprep.subr.mxu0 0.0
    %141 = vmatpush1.msra.mxu0 %v109
    %142 = vmatprep.subr.mxu0 0.0
    %143 = vmatpush1.msra.mxu0 0.0
    %144 = vmatprep.subr.mxu0 0.0
    %145 = vmatpush1.msra.mxu0 0.0
    %146 = vmatprep.subr.mxu0 0.0
    %147 = vmatpush1.msra.mxu0 0.0
    %148 = vmatprep.subr.mxu0 0.0
    %149 = vmatpush1.msra.mxu0 0.0
    %150 = vmatprep.subr.mxu0 0.0
    %151 = vmatpush1.msra.mxu0 0.0
    %152 = vmatprep.subr.mxu0 0.0
    %153 = vmatpush1.msra.mxu0 0.0
    %154 = vmatprep.subr.mxu0 0.0
    %155 = vmatpush1.msra.mxu0 0.0
    %156 = vmatprep.subr.mxu0 0.0
    %157 = vmatpush1.msra.mxu0 0.0
    %158 = vmatprep.subr.mxu0 0.0
    %159 = vmatpush1.msra.mxu0 0.0
    %160 = vmatprep.subr.mxu0 0.0
    %161 = vmatpush1.msra.mxu0 0.0
    %162 = vmatprep.subr.mxu0 0.0
    %163 = vmatpush1.msra.mxu0 0.0
    %164 = vmatprep.subr.mxu0 0.0
    %165 = vmatpush1.msra.mxu0 0.0
    %166 = vmatprep.subr.mxu0 0.0
    %167 = vmatpush1.msra.mxu0 0.0
    %168 = vmatprep.subr.mxu0 0.0
    %169 = vmatpush1.msra.mxu0 0.0
    %170 = vmatprep.subr.mxu0 0.0
    %171 = vmatpush1.msra.mxu0 0.0
    %172 = vmatprep.subr.mxu0 0.0
    %173 = vmatpush1.msra.mxu0 0.0
    %174 = vmatprep.mubr.f32.mxu0 0.0
    %175 = vmatmul.mubr.f32.gmra.mrb[0].mxu0 %v78
    %v176 = vpop.f32.mrb[0].mxu0
    %v177 = vadd.f32 0.0, %v176
    %v178 = vpop.f32.mrb[0].mxu0
    %179 = vmatprep.mubr.f32.mxu0 0.0
    %180 = vmatmul.mubr.f32.gmra.mrb[0].mxu0 %v79
    %v181 = vpop.f32.mrb[0].mxu0
    %v182 = vadd.f32 0.0, %v181
    %v183 = vpop.f32.mrb[0].mxu0
    %184 = vmatprep.mubr.f32.mxu0 0.0
    %185 = vmatmul.mubr.f32.gmra.mrb[0].mxu0 %v80
    %v186 = vpop.f32.mrb[0].mxu0
    %v187 = vadd.f32 0.0, %v186
    %v188 = vpop.f32.mrb[0].mxu0
    %189 = vmatprep.mubr.f32.mxu0 0.0
    %190 = vmatmul.mubr.f32.gmra.mrb[0].mxu0 %v81
    %v191 = vpop.f32.mrb[0].mxu0
    %v192 = vadd.f32 0.0, %v191
    %v193 = vpop.f32.mrb[0].mxu0
    %194 = vmatprep.mubr.f32.mxu0 0.0
    %195 = vmatmul.mubr.f32.gmra.mrb[0].mxu0 %v82
    %v196 = vpop.f32.mrb[0].mxu0
    %v197 = vadd.f32 0.0, %v196
    %v198 = vpop.f32.mrb[0].mxu0
    %199 = vmatprep.mubr.f32.mxu0 0.0
    %200 = vmatmul.mubr.f32.gmra.mrb[0].mxu0 %v83
    %v201 = vpop.f32.mrb[0].mxu0
    %v202 = vadd.f32 0.0, %v201
    %v203 = vpop.f32.mrb[0].mxu0
    %204 = vmatprep.mubr.f32.mxu0 0.0
    %205 = vmatmul.mubr.f32.gmra.mrb[0].mxu0 %v84
    %v206 = vpop.f32.mrb[0].mxu0
    %v207 = vadd.f32 0.0, %v206
    %v208 = vpop.f32.mrb[0].mxu0
    %209 = vmatprep.mubr.f32.mxu0 0.0
    %210 = vmatmul.mubr.f32.gmra.mrb[0].mxu0 %v85
    %v211 = vpop.f32.mrb[0].mxu0
    %v212 = vadd.f32 0.0, %v211
    %v213 = vpop.f32.mrb[0].mxu0
    %214 = vmatprep.mubr.f32.mxu0 0.0
    %215 = vmatmul.mubr.f32.gmra.mrb[0].mxu0 %v86
    %v216 = vpop.f32.mrb[0].mxu0
    %v217 = vadd.f32 0.0, %v216
    %v218 = vpop.f32.mrb[0].mxu0
    %219 = vmatprep.mubr.f32.mxu0 0.0
    %220 = vmatmul.mubr.f32.gmra.mrb[0].mxu0 %v87
    %v221 = vpop.f32.mrb[0].mxu0
    %v222 = vadd.f32 0.0, %v221
    %v223 = vpop.f32.mrb[0].mxu0
    %224 = vmatprep.mubr.f32.mxu0 0.0
    %225 = vmatmul.mubr.f32.gmra.mrb[0].mxu0 %v88
    %v226 = vpop.f32.mrb[0].mxu0
    %v227 = vadd.f32 0.0, %v226
    %v228 = vpop.f32.mrb[0].mxu0
    %229 = vmatprep.mubr.f32.mxu0 0.0
    %230 = vmatmul.mubr.f32.gmra.mrb[0].mxu0 %v89
    %v231 = vpop.f32.mrb[0].mxu0
    %v232 = vadd.f32 0.0, %v231
    %v233 = vpop.f32.mrb[0].mxu0
    %234 = vmatprep.mubr.f32.mxu0 0.0
    %235 = vmatmul.mubr.f32.gmra.mrb[0].mxu0 %v90
    %v236 = vpop.f32.mrb[0].mxu0
    %v237 = vadd.f32 0.0, %v236
    %v238 = vpop.f32.mrb[0].mxu0
    %239 = vmatprep.mubr.f32.mxu0 0.0
    %240 = vmatmul.mubr.f32.gmra.mrb[0].mxu0 %v91
    %v241 = vpop.f32.mrb[0].mxu0
    %v242 = vadd.f32 0.0, %v241
    %v243 = vpop.f32.mrb[0].mxu0
    %244 = vmatprep.mubr.f32.mxu0 0.0
    %245 = vmatmul.mubr.f32.gmra.mrb[0].mxu0 %v92
    %v246 = vpop.f32.mrb[0].mxu0
    %v247 = vadd.f32 0.0, %v246
    %v248 = vpop.f32.mrb[0].mxu0
    %249 = vmatprep.mubr.f32.mxu0 0.0
    %250 = vmatmul.mubr.f32.gmra.mrb[0].mxu0 %v93
    %v251 = vpop.f32.mrb[0].mxu0
    %v252 = vadd.f32 0.0, %v251
    %v253 = vpop.f32.mrb[0].mxu0
    %254 = vdwg.mxu0
    %255 = vmatprep.subr.mxu0 0.0
    %256 = vmatpush1.msra.mxu0 %v62
    %257 = vmatprep.subr.mxu0 0.0
    %258 = vmatpush1.msra.mxu0 %v63
    %259 = vmatprep.subr.mxu0 0.0
    %260 = vmatpush1.msra.mxu0 %v64
    %261 = vmatprep.subr.mxu0 0.0
    %262 = vmatpush1.msra.mxu0 %v65
    %263 = vmatprep.subr.mxu0 0.0
    %264 = vmatpush1.msra.mxu0 %v66
    %265 = vmatprep.subr.mxu0 0.0
    %266 = vmatpush1.msra.mxu0 %v67
    %267 = vmatprep.subr.mxu0 0.0
    %268 = vmatpush1.msra.mxu0 %v68
    %269 = vmatprep.subr.mxu0 0.0
    %270 = vmatpush1.msra.mxu0 %v69
    %271 = vmatprep.subr.mxu0 0.0
    %272 = vmatpush1.msra.mxu0 %v70
    %273 = vmatprep.subr.mxu0 0.0
    %274 = vmatpush1.msra.mxu0 %v71
    %275 = vmatprep.subr.mxu0 0.0
    %276 = vmatpush1.msra.mxu0 %v72
    %277 = vmatprep.subr.mxu0 0.0
    %278 = vmatpush1.msra.mxu0 %v73
    %279 = vmatprep.subr.mxu0 0.0
    %280 = vmatpush1.msra.mxu0 %v74
    %281 = vmatprep.subr.mxu0 0.0
    %282 = vmatpush1.msra.mxu0 %v75
    %283 = vmatprep.subr.mxu0 0.0
    %284 = vmatpush1.msra.mxu0 %v76
    %285 = vmatprep.subr.mxu0 0.0
    %286 = vmatpush1.msra.mxu0 %v77
    %287 = vmatprep.subr.mxu0 0.0
    %288 = vmatpush1.msra.mxu0 0.0
    %289 = vmatprep.subr.mxu0 0.0
    %290 = vmatpush1.msra.mxu0 0.0
    %291 = vmatprep.subr.mxu0 0.0
    %292 = vmatpush1.msra.mxu0 0.0
    %293 = vmatprep.subr.mxu0 0.0
    %294 = vmatpush1.msra.mxu0 0.0
    %295 = vmatprep.subr.mxu0 0.0
    %296 = vmatpush1.msra.mxu0 0.0
    %297 = vmatprep.subr.mxu0 0.0
    %298 = vmatpush1.msra.mxu0 0.0
    %299 = vmatprep.subr.mxu0 0.0
    %300 = vmatpush1.msra.mxu0 0.0
    %301 = vmatprep.subr.mxu0 0.0
    %302 = vmatpush1.msra.mxu0 0.0
    %303 = vmatprep.subr.mxu0 0.0
    %304 = vmatpush1.msra.mxu0 0.0
    %305 = vmatprep.subr.mxu0 0.0
    %306 = vmatpush1.msra.mxu0 0.0
    %307 = vmatprep.subr.mxu0 0.0
    %308 = vmatpush1.msra.mxu0 0.0
    %309 = vmatprep.subr.mxu0 0.0
    %310 = vmatpush1.msra.mxu0 0.0
    %311 = vmatprep.subr.mxu0 0.0
    %312 = vmatpush1.msra.mxu0 0.0
    %313 = vmatprep.subr.mxu0 0.0
    %314 = vmatpush1.msra.mxu0 0.0
    %315 = vmatprep.subr.mxu0 0.0
    %316 = vmatpush1.msra.mxu0 0.0
    %317 = vmatprep.subr.mxu0 0.0
    %318 = vmatpush1.msra.mxu0 0.0
    %319 = vmatprep.mubr.f32.mxu0 0.0
    %320 = vmatmul.mubr.f32.gmra.mrb[0].mxu0 %v46
    %v321 = vpop.f32.mrb[0].mxu0
    %v322 = vadd.f32 %v177, %v321
    %v323 = vpop.f32.mrb[0].mxu0
    %324 = vmatprep.mubr.f32.mxu0 0.0
    %325 = vmatmul.mubr.f32.gmra.mrb[0].mxu0 %v47
    %v326 = vpop.f32.mrb[0].mxu0
    %v327 = vadd.f32 %v182, %v326
    %v328 = vpop.f32.mrb[0].mxu0
    %329 = vmatprep.mubr.f32.mxu0 0.0
    %330 = vmatmul.mubr.f32.gmra.mrb[0].mxu0 %v48
    %v331 = vpop.f32.mrb[0].mxu0
    %v332 = vadd.f32 %v187, %v331
    %v333 = vpop.f32.mrb[0].mxu0
    %334 = vmatprep.mubr.f32.mxu0 0.0
    %335 = vmatmul.mubr.f32.gmra.mrb[0].mxu0 %v49
    %v336 = vpop.f32.mrb[0].mxu0
    %v337 = vadd.f32 %v192, %v336
    %v338 = vpop.f32.mrb[0].mxu0
    %339 = vmatprep.mubr.f32.mxu0 0.0
    %340 = vmatmul.mubr.f32.gmra.mrb[0].mxu0 %v50
    %v341 = vpop.f32.mrb[0].mxu0
    %v342 = vadd.f32 %v197, %v341
    %v343 = vpop.f32.mrb[0].mxu0
    %344 = vmatprep.mubr.f32.mxu0 0.0
    %345 = vmatmul.mubr.f32.gmra.mrb[0].mxu0 %v51
    %v346 = vpop.f32.mrb[0].mxu0
    %v347 = vadd.f32 %v202, %v346
    %v348 = vpop.f32.mrb[0].mxu0
    %349 = vmatprep.mubr.f32.mxu0 0.0
    %350 = vmatmul.mubr.f32.gmra.mrb[0].mxu0 %v52
    %v351 = vpop.f32.mrb[0].mxu0
    %v352 = vadd.f32 %v207, %v351
    %v353 = vpop.f32.mrb[0].mxu0
    %354 = vmatprep.mubr.f32.mxu0 0.0
    %355 = vmatmul.mubr.f32.gmra.mrb[0].mxu0 %v53
    %v356 = vpop.f32.mrb[0].mxu0
    %v357 = vadd.f32 %v212, %v356
    %v358 = vpop.f32.mrb[0].mxu0
    %359 = vmatprep.mubr.f32.mxu0 0.0
    %360 = vmatmul.mubr.f32.gmra.mrb[0].mxu0 %v54
    %v361 = vpop.f32.mrb[0].mxu0
    %v362 = vadd.f32 %v217, %v361
    %v363 = vpop.f32.mrb[0].mxu0
    %364 = vmatprep.mubr.f32.mxu0 0.0
    %365 = vmatmul.mubr.f32.gmra.mrb[0].mxu0 %v55
    %v366 = vpop.f32.mrb[0].mxu0
    %v367 = vadd.f32 %v222, %v366
    %v368 = vpop.f32.mrb[0].mxu0
    %369 = vmatprep.mubr.f32.mxu0 0.0
    %370 = vmatmul.mubr.f32.gmra.mrb[0].mxu0 %v56
    %v371 = vpop.f32.mrb[0].mxu0
    %v372 = vadd.f32 %v227, %v371
    %v373 = vpop.f32.mrb[0].mxu0
    %374 = vmatprep.mubr.f32.mxu0 0.0
    %375 = vmatmul.mubr.f32.gmra.mrb[0].mxu0 %v57
    %v376 = vpop.f32.mrb[0].mxu0
    %v377 = vadd.f32 %v232, %v376
    %v378 = vpop.f32.mrb[0].mxu0
    %379 = vmatprep.mubr.f32.mxu0 0.0
    %380 = vmatmul.mubr.f32.gmra.mrb[0].mxu0 %v58
    %v381 = vpop.f32.mrb[0].mxu0
    %v382 = vadd.f32 %v237, %v381
    %v383 = vpop.f32.mrb[0].mxu0
    %384 = vmatprep.mubr.f32.mxu0 0.0
    %385 = vmatmul.mubr.f32.gmra.mrb[0].mxu0 %v59
    %v386 = vpop.f32.mrb[0].mxu0
    %v387 = vadd.f32 %v242, %v386
    %v388 = vpop.f32.mrb[0].mxu0
    %389 = vmatprep.mubr.f32.mxu0 0.0
    %390 = vmatmul.mubr.f32.gmra.mrb[0].mxu0 %v60
    %v391 = vpop.f32.mrb[0].mxu0
    %v392 = vadd.f32 %v247, %v391
    %v393 = vpop.f32.mrb[0].mxu0
    %394 = vmatprep.mubr.f32.mxu0 0.0
    %395 = vmatmul.mubr.f32.gmra.mrb[0].mxu0 %v61
    %v396 = vpop.f32.mrb[0].mxu0
    %v397 = vadd.f32 %v252, %v396
    %v398 = vpop.f32.mrb[0].mxu0
    %399 = vdwg.mxu0
    %v400 = vld [vmem:[%s4] sm:$0x1]
    %v402 = vlaneseq
    %v403 = vshrl.u32 %v402, 7
    %v404 = vsub.s32 0, %v403
    %v405 = vrot.slane %v400, %v404
    %v407 = vadd.f32 %v322, %v405
    %v408 = vadd.f32 %v327, %v405
    %v409 = vadd.f32 %v332, %v405
    %v410 = vadd.f32 %v337, %v405
    %v411 = vadd.f32 %v342, %v405
    %v412 = vadd.f32 %v347, %v405
    %v413 = vadd.f32 %v352, %v405
    %v414 = vadd.f32 %v357, %v405
    %v415 = vadd.f32 %v362, %v405
    %v416 = vadd.f32 %v367, %v405
    %v417 = vadd.f32 %v372, %v405
    %v418 = vadd.f32 %v377, %v405
    %v419 = vadd.f32 %v382, %v405
    %v420 = vadd.f32 %v387, %v405
    %v421 = vadd.f32 %v392, %v405
    %v422 = vadd.f32 %v397, %v405
    %v423 = vmax.f32 %v407, 0.0
    %v424 = vmax.f32 %v408, 0.0
    %v425 = vmax.f32 %v409, 0.0
    %v426 = vmax.f32 %v410, 0.0
    %v427 = vmax.f32 %v411, 0.0
    %v428 = vmax.f32 %v412, 0.0
    %v429 = vmax.f32 %v413, 0.0
    %v430 = vmax.f32 %v414, 0.0
    %v431 = vmax.f32 %v415, 0.0
    %v432 = vmax.f32 %v416, 0.0
    %v433 = vmax.f32 %v417, 0.0
    %v434 = vmax.f32 %v418, 0.0
    %v435 = vmax.f32 %v419, 0.0
    %v436 = vmax.f32 %v420, 0.0
    %v437 = vmax.f32 %v421, 0.0
    %v438 = vmax.f32 %v422, 0.0
    %v439 = vld [vmem:[%s5] sm:$0xff]
    %v440 = vld [vmem:[%s5 + $0x8] sm:$0xff]
    %v441 = vld [vmem:[%s5 + $0x10] sm:$0xff]
    %v442 = vld [vmem:[%s5 + $0x18] sm:$0xff]
    %v443 = vld [vmem:[%s5 + $0x20] sm:$0xff]
    %v444 = vld [vmem:[%s5 + $0x28] sm:$0xff]
    %v445 = vld [vmem:[%s5 + $0x30] sm:$0xff]
    %v446 = vld [vmem:[%s5 + $0x38] sm:$0xff]
    %v447 = vld [vmem:[%s5 + $0x40] sm:$0xff]
    %v448 = vld [vmem:[%s5 + $0x48] sm:$0xff]
    %v449 = vld [vmem:[%s5 + $0x50] sm:$0xff]
    %v450 = vld [vmem:[%s5 + $0x58] sm:$0xff]
    %v451 = vld [vmem:[%s5 + $0x60] sm:$0xff]
    %v452 = vld [vmem:[%s5 + $0x68] sm:$0xff]
    %v453 = vld [vmem:[%s5 + $0x70] sm:$0xff]
    %v454 = vld [vmem:[%s5 + $0x78] sm:$0xff]
    %v455 = vld [vmem:[%s6] sm:$0x1]
    %v457 = vlaneseq
    %v458 = vshrl.u32 %v457, 7
    %v459 = vsub.s32 0, %v458
    %v460 = vrot.slane %v455, %v459
    %462 = vmatprep.subr.mxu0 0.0
    %463 = vmatpush1.msra.mxu0 %v439
    %464 = vmatprep.subr.mxu0 0.0
    %465 = vmatpush1.msra.mxu0 %v440
    %466 = vmatprep.subr.mxu0 0.0
    %467 = vmatpush1.msra.mxu0 %v441
    %468 = vmatprep.subr.mxu0 0.0
    %469 = vmatpush1.msra.mxu0 %v442
    %470 = vmatprep.subr.mxu0 0.0
    %471 = vmatpush1.msra.mxu0 %v443
    %472 = vmatprep.subr.mxu0 0.0
    %473 = vmatpush1.msra.mxu0 %v444
    %474 = vmatprep.subr.mxu0 0.0
    %475 = vmatpush1.msra.mxu0 %v445
    %476 = vmatprep.subr.mxu0 0.0
    %477 = vmatpush1.msra.mxu0 %v446
    %478 = vmatprep.subr.mxu0 0.0
    %479 = vmatpush1.msra.mxu0 %v447
    %480 = vmatprep.subr.mxu0 0.0
    %481 = vmatpush1.msra.mxu0 %v448
    %482 = vmatprep.subr.mxu0 0.0
    %483 = vmatpush1.msra.mxu0 %v449
    %484 = vmatprep.subr.mxu0 0.0
    %485 = vmatpush1.msra.mxu0 %v450
    %486 = vmatprep.subr.mxu0 0.0
    %487 = vmatpush1.msra.mxu0 %v451
    %488 = vmatprep.subr.mxu0 0.0
    %489 = vmatpush1.msra.mxu0 %v452
    %490 = vmatprep.subr.mxu0 0.0
    %491 = vmatpush1.msra.mxu0 %v453
    %492 = vmatprep.subr.mxu0 0.0
    %493 = vmatpush1.msra.mxu0 %v454
    %494 = vmatprep.subr.mxu0 0.0
    %495 = vmatpush1.msra.mxu0 0.0
    %496 = vmatprep.subr.mxu0 0.0
    %497 = vmatpush1.msra.mxu0 0.0
    %498 = vmatprep.subr.mxu0 0.0
    %499 = vmatpush1.msra.mxu0 0.0
    %500 = vmatprep.subr.mxu0 0.0
    %501 = vmatpush1.msra.mxu0 0.0
    %502 = vmatprep.subr.mxu0 0.0
    %503 = vmatpush1.msra.mxu0 0.0
    %504 = vmatprep.subr.mxu0 0.0
    %505 = vmatpush1.msra.mxu0 0.0
    %506 = vmatprep.subr.mxu0 0.0
    %507 = vmatpush1.msra.mxu0 0.0
    %508 = vmatprep.subr.mxu0 0.0
    %509 = vmatpush1.msra.mxu0 0.0
    %510 = vmatprep.subr.mxu0 0.0
    %511 = vmatpush1.msra.mxu0 0.0
    %512 = vmatprep.subr.mxu0 0.0
    %513 = vmatpush1.msra.mxu0 0.0
    %514 = vmatprep.subr.mxu0 0.0
    %515 = vmatpush1.msra.mxu0 0.0
    %516 = vmatprep.subr.mxu0 0.0
    %517 = vmatpush1.msra.mxu0 0.0
    %518 = vmatprep.subr.mxu0 0.0
    %519 = vmatpush1.msra.mxu0 0.0
    %520 = vmatprep.subr.mxu0 0.0
    %521 = vmatpush1.msra.mxu0 0.0
    %522 = vmatprep.subr.mxu0 0.0
    %523 = vmatpush1.msra.mxu0 0.0
    %524 = vmatprep.subr.mxu0 0.0
    %525 = vmatpush1.msra.mxu0 0.0
    %526 = vmatprep.mubr.f32.mxu0 0.0
    %527 = vmatmul.mubr.f32.gmra.mrb[0].mxu0 %v423
    %v528 = vpop.f32.mrb[0].mxu0
    %v529 = vadd.f32 %v460, %v528
    %v530 = vpop.f32.mrb[0].mxu0
    %531 = vmatprep.mubr.f32.mxu0 0.0
    %532 = vmatmul.mubr.f32.gmra.mrb[0].mxu0 %v424
    %v533 = vpop.f32.mrb[0].mxu0
    %v534 = vadd.f32 %v460, %v533
    %v535 = vpop.f32.mrb[0].mxu0
    %536 = vmatprep.mubr.f32.mxu0 0.0
    %537 = vmatmul.mubr.f32.gmra.mrb[0].mxu0 %v425
    %v538 = vpop.f32.mrb[0].mxu0
    %v539 = vadd.f32 %v460, %v538
    %v540 = vpop.f32.mrb[0].mxu0
    %541 = vmatprep.mubr.f32.mxu0 0.0
    %542 = vmatmul.mubr.f32.gmra.mrb[0].mxu0 %v426
    %v543 = vpop.f32.mrb[0].mxu0
    %v544 = vadd.f32 %v460, %v543
    %v545 = vpop.f32.mrb[0].mxu0
    %546 = vmatprep.mubr.f32.mxu0 0.0
    %547 = vmatmul.mubr.f32.gmra.mrb[0].mxu0 %v427
    %v548 = vpop.f32.mrb[0].mxu0
    %v549 = vadd.f32 %v460, %v548
    %v550 = vpop.f32.mrb[0].mxu0
    %551 = vmatprep.mubr.f32.mxu0 0.0
    %552 = vmatmul.mubr.f32.gmra.mrb[0].mxu0 %v428
    %v553 = vpop.f32.mrb[0].mxu0
    %v554 = vadd.f32 %v460, %v553
    %v555 = vpop.f32.mrb[0].mxu0
    %556 = vmatprep.mubr.f32.mxu0 0.0
    %557 = vmatmul.mubr.f32.gmra.mrb[0].mxu0 %v429
    %v558 = vpop.f32.mrb[0].mxu0
    %v559 = vadd.f32 %v460, %v558
    %v560 = vpop.f32.mrb[0].mxu0
    %561 = vmatprep.mubr.f32.mxu0 0.0
    %562 = vmatmul.mubr.f32.gmra.mrb[0].mxu0 %v430
    %v563 = vpop.f32.mrb[0].mxu0
    %v564 = vadd.f32 %v460, %v563
    %v565 = vpop.f32.mrb[0].mxu0
    %566 = vmatprep.mubr.f32.mxu0 0.0
    %567 = vmatmul.mubr.f32.gmra.mrb[0].mxu0 %v431
    %v568 = vpop.f32.mrb[0].mxu0
    %v569 = vadd.f32 %v460, %v568
    %v570 = vpop.f32.mrb[0].mxu0
    %571 = vmatprep.mubr.f32.mxu0 0.0
    %572 = vmatmul.mubr.f32.gmra.mrb[0].mxu0 %v432
    %v573 = vpop.f32.mrb[0].mxu0
    %v574 = vadd.f32 %v460, %v573
    %v575 = vpop.f32.mrb[0].mxu0
    %576 = vmatprep.mubr.f32.mxu0 0.0
    %577 = vmatmul.mubr.f32.gmra.mrb[0].mxu0 %v433
    %v578 = vpop.f32.mrb[0].mxu0
    %v579 = vadd.f32 %v460, %v578
    %v580 = vpop.f32.mrb[0].mxu0
    %581 = vmatprep.mubr.f32.mxu0 0.0
    %582 = vmatmul.mubr.f32.gmra.mrb[0].mxu0 %v434
    %v583 = vpop.f32.mrb[0].mxu0
    %v584 = vadd.f32 %v460, %v583
    %v585 = vpop.f32.mrb[0].mxu0
    %586 = vmatprep.mubr.f32.mxu0 0.0
    %587 = vmatmul.mubr.f32.gmra.mrb[0].mxu0 %v435
    %v588 = vpop.f32.mrb[0].mxu0
    %v589 = vadd.f32 %v460, %v588
    %v590 = vpop.f32.mrb[0].mxu0
    %591 = vmatprep.mubr.f32.mxu0 0.0
    %592 = vmatmul.mubr.f32.gmra.mrb[0].mxu0 %v436
    %v593 = vpop.f32.mrb[0].mxu0
    %v594 = vadd.f32 %v460, %v593
    %v595 = vpop.f32.mrb[0].mxu0
    %596 = vmatprep.mubr.f32.mxu0 0.0
    %597 = vmatmul.mubr.f32.gmra.mrb[0].mxu0 %v437
    %v598 = vpop.f32.mrb[0].mxu0
    %v599 = vadd.f32 %v460, %v598
    %v600 = vpop.f32.mrb[0].mxu0
    %601 = vmatprep.mubr.f32.mxu0 0.0
    %602 = vmatmul.mubr.f32.gmra.mrb[0].mxu0 %v438
    %v603 = vpop.f32.mrb[0].mxu0
    %v604 = vadd.f32 %v460, %v603
    %v605 = vpop.f32.mrb[0].mxu0
    %606 = vdwg.mxu0
    %v607 = vmax.f32 %v529, 0.0
    %v608 = vmax.f32 %v534, 0.0
    %v609 = vmax.f32 %v539, 0.0
    %v610 = vmax.f32 %v544, 0.0
    %v611 = vmax.f32 %v549, 0.0
    %v612 = vmax.f32 %v554, 0.0
    %v613 = vmax.f32 %v559, 0.0
    %v614 = vmax.f32 %v564, 0.0
    %v615 = vmax.f32 %v569, 0.0
    %v616 = vmax.f32 %v574, 0.0
    %v617 = vmax.f32 %v579, 0.0
    %v618 = vmax.f32 %v584, 0.0
    %v619 = vmax.f32 %v589, 0.0
    %v620 = vmax.f32 %v594, 0.0
    %v621 = vmax.f32 %v599, 0.0
    %v622 = vmax.f32 %v604, 0.0
    %v623 = vld [vmem:[#allocation3] sm:$0x1]
    %v624 = vld [vmem:[#allocation2] sm:$0x1]
    %626 = vset.pattern.permute.xlu0 0
    %627 = vperm.xlu0 %626, %v624
    %v628 = vpop.permute.xlu0 %627
    %v630 = vlaneseq
    %v631 = vshrl.u32 %v630, 7
    %v632 = vsub.s32 0, %v631
    %v633 = vrot.slane %v628, %v632
    %634 = vmatprep.subr.mxu0 0.0
    %635 = vmatpush1.xpose.msra.mxu0 %v607
    %636 = vmatprep.subr.mxu0 0.0
    %637 = vmatpush1.xpose.msra.mxu0 %v608
    %638 = vmatprep.subr.mxu0 0.0
    %639 = vmatpush1.xpose.msra.mxu0 %v609
    %640 = vmatprep.subr.mxu0 0.0
    %641 = vmatpush1.xpose.msra.mxu0 %v610
    %642 = vmatprep.subr.mxu0 0.0
    %643 = vmatpush1.xpose.msra.mxu0 %v611
    %644 = vmatprep.subr.mxu0 0.0
    %645 = vmatpush1.xpose.msra.mxu0 %v612
    %646 = vmatprep.subr.mxu0 0.0
    %647 = vmatpush1.xpose.msra.mxu0 %v613
    %648 = vmatprep.subr.mxu0 0.0
    %649 = vmatpush1.xpose.msra.mxu0 %v614
    %650 = vmatprep.subr.mxu0 0.0
    %651 = vmatpush1.xpose.msra.mxu0 %v615
    %652 = vmatprep.subr.mxu0 0.0
    %653 = vmatpush1.xpose.msra.mxu0 %v616
    %654 = vmatprep.subr.mxu0 0.0
    %655 = vmatpush1.xpose.msra.mxu0 %v617
    %656 = vmatprep.subr.mxu0 0.0
    %657 = vmatpush1.xpose.msra.mxu0 %v618
    %658 = vmatprep.subr.mxu0 0.0
    %659 = vmatpush1.xpose.msra.mxu0 %v619
    %660 = vmatprep.subr.mxu0 0.0
    %661 = vmatpush1.xpose.msra.mxu0 %v620
    %662 = vmatprep.subr.mxu0 0.0
    %663 = vmatpush1.xpose.msra.mxu0 %v621
    %664 = vmatprep.subr.mxu0 0.0
    %665 = vmatpush1.xpose.msra.mxu0 %v622
    %666 = vmatprep.subr.mxu0 0.0
    %667 = vmatpush1.xpose.msra.mxu0 0.0
    %668 = vmatprep.subr.mxu0 0.0
    %669 = vmatpush1.xpose.msra.mxu0 0.0
    %670 = vmatprep.subr.mxu0 0.0
    %671 = vmatpush1.xpose.msra.mxu0 0.0
    %672 = vmatprep.subr.mxu0 0.0
    %673 = vmatpush1.xpose.msra.mxu0 0.0
    %674 = vmatprep.subr.mxu0 0.0
    %675 = vmatpush1.xpose.msra.mxu0 0.0
    %676 = vmatprep.subr.mxu0 0.0
    %677 = vmatpush1.xpose.msra.mxu0 0.0
    %678 = vmatprep.subr.mxu0 0.0
    %679 = vmatpush1.xpose.msra.mxu0 0.0
    %680 = vmatprep.subr.mxu0 0.0
    %681 = vmatpush1.xpose.msra.mxu0 0.0
    %682 = vmatprep.subr.mxu0 0.0
    %683 = vmatpush1.xpose.msra.mxu0 0.0
    %684 = vmatprep.subr.mxu0 0.0
    %685 = vmatpush1.xpose.msra.mxu0 0.0
    %686 = vmatprep.subr.mxu0 0.0
    %687 = vmatpush1.xpose.msra.mxu0 0.0
    %688 = vmatprep.subr.mxu0 0.0
    %689 = vmatpush1.xpose.msra.mxu0 0.0
    %690 = vmatprep.subr.mxu0 0.0
    %691 = vmatpush1.xpose.msra.mxu0 0.0
    %692 = vmatprep.subr.mxu0 0.0
    %693 = vmatpush1.xpose.msra.mxu0 0.0
    %694 = vmatprep.subr.mxu0 0.0
    %695 = vmatpush1.xpose.msra.mxu0 0.0
    %696 = vmatprep.subr.mxu0 0.0
    %697 = vmatpush1.xpose.msra.mxu0 0.0
    %698 = vmatprep.mubr.f32.mxu0 0.0
    %699 = vmatmul.mubr.f32.gmra.mrb[0].mxu0 %v623
    %v700 = vpop.f32.mrb[0].mxu0
    %v701 = vadd.f32 %v633, %v700
    %v702 = vpop.f32.mrb[0].mxu0
    %703 = vdwg.mxu0
    %704 = vst [vmem:[%s9] sm:$0x1] %v701
    // Predicated region
    $region42: #{value_guide_forward.1} parent=1 // pred_check
      _
    $region43: #{value_guide_forward.1} parent=1 // pred_check_branch
      %706 = sbr.rel (0) target = $region45
    $region44: #{value_guide_forward.1} parent=1 // pred_region
      _
    $region45: #{value_guide_forward.1} parent=1 // pred_fallthru
      _
    // Predicated region
    $region46: #{value_guide_forward.1} parent=1 // pred_check
      _
    $region47: #{value_guide_forward.1} parent=1 // pred_check_branch
      %708 = sbr.rel (0) target = $region49
    $region48: #{value_guide_forward.1} parent=1 // pred_region
      _
    $region49: #{value_guide_forward.1} parent=1 // pred_fallthru
      _
    %709 = vsyncpa [#allocation4], 1

</llo_original>
